<compile_context>
chip_gen: v7x
topology: tpu7x:2x2x1
jax: 0.10.0
libtpu: 0.0.40
codegen_flags: <defaults>
</compile_context>

<pallas_src>
import jax
import jax.numpy as jnp
from jax import lax
from jax.experimental import pallas as pl
from jax.experimental.pallas import tpu as pltpu


def _round_up(n, m):
    return ((n + m - 1) // m) * m


def mlp_kernel(x_ref,
               w1_ref, b1_ref,
               w2_ref, b2_ref,
               w3_ref, b3_ref,
               w4_ref, b4_ref,
               out_ref):
    # x_ref: [TILE_B, 6] (batch-major tile straight from the caller's array).
    # Everything downstream is lane-dense: batch on the lane (last) dim.
    xb = x_ref[...].astype(jnp.bfloat16)                       # [TILE_B, 6]

    # fc1 + relu on the MXU. Contract over x's last dim (== pl.dot trans_b=True),
    # so the [TILE_B, 6] tile never needs a wrapper-side transpose.
    h = lax.dot_general(w1_ref[...], xb,
                        dimension_numbers=(((1,), (1,)), ((), ())),
                        preferred_element_type=jnp.float32)    # [256, TILE_B]
    h = jnp.maximum(h + b1_ref[...], 0.0)

    # fc2 + relu (dropout == identity in eval mode); bf16 operands, f32 accumulate.
    h = jnp.dot(w2_ref[...], h.astype(jnp.bfloat16),
                preferred_element_type=jnp.float32) + b2_ref[...]
    h = jnp.maximum(h, 0.0)                                    # [128, TILE_B]

    # fc3 + relu
    h = jnp.dot(w3_ref[...], h.astype(jnp.bfloat16),
                preferred_element_type=jnp.float32) + b3_ref[...]
    h = jnp.maximum(h, 0.0)                                    # [128, TILE_B]

    # fc4 (no activation); output stays lane-dense [6, TILE_B] (unmasked stores).
    out_ref[...] = (jnp.dot(w4_ref[...], h.astype(jnp.bfloat16),
                            preferred_element_type=jnp.float32)
                    + b4_ref[...]).astype(out_ref.dtype)


def _pick_tile_b(batch, tile_b):
    """Largest lane tile that (a) caps at tile_b, (b) doesn't over-pad tiny
    batches, (c) keeps >= 2 grid steps once the batch is big enough (so v7x's
    two TensorCores both get work under dimension_semantics=('parallel',))."""
    t = min(tile_b, _round_up(max(batch, 1), 256))
    if batch >= 512:
        t = min(t, _round_up(pl.cdiv(batch, 2), 256))
    return max(t, 256)


def enhanced_nn_forward(x, kparams, *, tile_b=4096, lane_major_output=False):
    """x: [B, 6]; kparams: kernel-layout params from prepare_params().

    Returns [B, 6] (PyTorch layout) by default; pass lane_major_output=True to
    get the lane-dense [6, B] result with no wrapper transpose.
    """
    B = x.shape[0]
    tb = _pick_tile_b(B, tile_b)
    Bp = _round_up(B, tb)
    if Bp != B:
        x = jnp.pad(x, ((0, Bp - B), (0, 0)))

    const = lambda i: (0, 0)
    in_specs = [
        pl.BlockSpec((tb, 6), lambda i: (i, 0)),               # x tile (pipelined)
        pl.BlockSpec((256, 6), const), pl.BlockSpec((256, 1), const),    # w1, b1
        pl.BlockSpec((128, 256), const), pl.BlockSpec((128, 1), const),  # w2, b2
        pl.BlockSpec((128, 128), const), pl.BlockSpec((128, 1), const),  # w3, b3
        pl.BlockSpec((6, 128), const), pl.BlockSpec((6, 1), const),      # w4, b4
    ]
    out_specs = pl.BlockSpec((6, tb), lambda i: (0, i))

    flops = 2 * Bp * (6 * 256 + 256 * 128 + 128 * 128 + 128 * 6)
    weight_bytes = sum(int(v.size) * v.dtype.itemsize for v in kparams.values())
    bytes_accessed = Bp * 6 * (x.dtype.itemsize + 4) + weight_bytes
    cost = pl.CostEstimate(flops=flops, transcendentals=0,
                           bytes_accessed=bytes_accessed)

    out_t = pl.pallas_call(
        mlp_kernel,
        out_shape=jax.ShapeDtypeStruct((6, Bp), jnp.float32),
        grid=(Bp // tb,),
        in_specs=in_specs,
        out_specs=out_specs,
        compiler_params=pltpu.CompilerParams(
            dimension_semantics=("parallel",),
            vmem_limit_bytes=32 * 1024 * 1024),
        cost_estimate=cost,
    )(x,
      kparams["w1"], kparams["b1"],
      kparams["w2"], kparams["b2"],
      kparams["w3"], kparams["b3"],
      kparams["w4"], kparams["b4"])

    out_t = out_t[:, :B]
    if lane_major_output:
        return out_t                                           # [6, B]
    return jnp.transpose(out_t)                                # [B, 6]


def init_params(key):
    """PyTorch nn.Linear layout/init: W [out, in], b [out], uniform(+-1/sqrt(fan_in))."""
    dims = [(6, 256), (256, 128), (128, 128), (128, 6)]
    params = {}
    keys = jax.random.split(key, 2 * len(dims))
    for i, (fan_in, fan_out) in enumerate(dims):
        bound = 1.0 / jnp.sqrt(fan_in)
        params[f"w{i+1}"] = jax.random.uniform(
            keys[2 * i], (fan_out, fan_in),
            minval=-bound, maxval=bound, dtype=jnp.float32)
        params[f"b{i+1}"] = jax.random.uniform(
            keys[2 * i + 1], (fan_out,),
            minval=-bound, maxval=bound, dtype=jnp.float32)
    return params


def prepare_params(params):
    """One-time cast/reshape to the kernel layout: weights bf16, biases (out, 1) f32."""
    return {
        "w1": params["w1"].astype(jnp.bfloat16),                   # [256, 6]
        "b1": params["b1"].reshape(256, 1).astype(jnp.float32),
        "w2": params["w2"].astype(jnp.bfloat16),                   # [128, 256]
        "b2": params["b2"].reshape(128, 1).astype(jnp.float32),
        "w3": params["w3"].astype(jnp.bfloat16),                   # [128, 128]
        "b3": params["b3"].reshape(128, 1).astype(jnp.float32),
        "w4": params["w4"].astype(jnp.bfloat16),                   # [6, 128]
        "b4": params["b4"].reshape(6, 1).astype(jnp.float32),
    }


def reference_forward(x, params):
    """Pure-JAX f32 reference (PyTorch eval-mode semantics: dropout = identity)."""
    h = jnp.maximum(x @ params["w1"].T + params["b1"], 0.0)
    h = jnp.maximum(h @ params["w2"].T + params["b2"], 0.0)
    h = jnp.maximum(h @ params["w3"].T + params["b3"], 0.0)
    return h @ params["w4"].T + params["b4"]


if __name__ == "__main__":
    key = jax.random.PRNGKey(0)
    pkey, xkey = jax.random.split(key)
    params = init_params(pkey)
    kparams = prepare_params(params)

    B = 8
    x = jax.random.normal(xkey, (B, 6), dtype=jnp.float32)

    out = enhanced_nn_forward(x, kparams)
    out = jax.block_until_ready(out)

    ref = reference_forward(x, params)
    assert out.shape == (B, 6)
    # All four layers use bf16 weights/activations (f32 accumulation) on the MXU,
    # so compare against the f32 reference with a bf16-sized tolerance.
    err = float(jnp.max(jnp.abs(out - ref)))
    assert jnp.allclose(out, ref, atol=5e-2, rtol=5e-2), f"max abs err {err}"

    print("KERNEL_OK")
</pallas_src>

<mosaic_0001>
module attributes {stable_mosaic.version = 11 : i64} {
  func.func @mlp_kernel(%arg0: i32, %arg1: memref<256x6xf32, #tpu.memory_space<vmem>>, %arg2: memref<256x6xbf16, #tpu.memory_space<vmem>>, %arg3: memref<256x1xf32, #tpu.memory_space<vmem>>, %arg4: memref<128x256xbf16, #tpu.memory_space<vmem>>, %arg5: memref<128x1xf32, #tpu.memory_space<vmem>>, %arg6: memref<128x128xbf16, #tpu.memory_space<vmem>>, %arg7: memref<128x1xf32, #tpu.memory_space<vmem>>, %arg8: memref<6x128xbf16, #tpu.memory_space<vmem>>, %arg9: memref<6x1xf32, #tpu.memory_space<vmem>>, %arg10: memref<6x256xf32, #tpu.memory_space<vmem>>) attributes {dimension_semantics = [#tpu.dimension_semantics<parallel>], iteration_bounds = array<i64: 1>, scalar_prefetch = 0 : i64, scratch_operands = 0 : i64, tpu.core_type = #tpu.core_type<tc>, window_params = [{transform_indices = @transform_0, window_bounds = array<i64: 256, 6>}, {pipeline_mode = #tpu.pipeline_mode<synchronous>, transform_indices = @transform_1, window_bounds = array<i64: 256, 6>}, {pipeline_mode = #tpu.pipeline_mode<synchronous>, transform_indices = @transform_2, window_bounds = array<i64: 256, 1>}, {pipeline_mode = #tpu.pipeline_mode<synchronous>, transform_indices = @transform_3, window_bounds = array<i64: 128, 256>}, {pipeline_mode = #tpu.pipeline_mode<synchronous>, transform_indices = @transform_4, window_bounds = array<i64: 128, 1>}, {pipeline_mode = #tpu.pipeline_mode<synchronous>, transform_indices = @transform_5, window_bounds = array<i64: 128, 128>}, {pipeline_mode = #tpu.pipeline_mode<synchronous>, transform_indices = @transform_6, window_bounds = array<i64: 128, 1>}, {pipeline_mode = #tpu.pipeline_mode<synchronous>, transform_indices = @transform_7, window_bounds = array<i64: 6, 128>}, {pipeline_mode = #tpu.pipeline_mode<synchronous>, transform_indices = @transform_8, window_bounds = array<i64: 6, 1>}, {transform_indices = @transform_9, window_bounds = array<i64: 6, 256>}]} {
    %c0 = arith.constant 0 : index
    %c0_0 = arith.constant 0 : index
    %0 = vector.load %arg1[%c0, %c0_0] : memref<256x6xf32, #tpu.memory_space<vmem>>, vector<256x6xf32>
    %1 = arith.truncf %0 : vector<256x6xf32> to vector<256x6xbf16>
    %c0_1 = arith.constant 0 : index
    %c0_2 = arith.constant 0 : index
    %2 = vector.load %arg2[%c0_1, %c0_2] : memref<256x6xbf16, #tpu.memory_space<vmem>>, vector<256x6xbf16>
    %cst = arith.constant dense<0.000000e+00> : vector<256x256xf32>
    %3 = tpu.matmul %2, %1, %cst {dimension_numbers = #tpu.dot_dimension_numbers<[1], [1], [0], [0], [0, 0, 1, 0], [], []>} : vector<256x6xbf16>, vector<256x6xbf16>, vector<256x256xf32> -> vector<256x256xf32>
    %c0_3 = arith.constant 0 : index
    %c0_4 = arith.constant 0 : index
    %4 = vector.load %arg3[%c0_3, %c0_4] : memref<256x1xf32, #tpu.memory_space<vmem>>, vector<256x1xf32>
    %5 = vector.broadcast %4 : vector<256x1xf32> to vector<256x256xf32>
    %6 = arith.addf %3, %5 : vector<256x256xf32>
    %cst_5 = arith.constant 0.000000e+00 : f32
    %7 = vector.broadcast %cst_5 : f32 to vector<256x256xf32>
    %8 = arith.maximumf %6, %7 : vector<256x256xf32>
    %c0_6 = arith.constant 0 : index
    %c0_7 = arith.constant 0 : index
    %9 = vector.load %arg4[%c0_6, %c0_7] : memref<128x256xbf16, #tpu.memory_space<vmem>>, vector<128x256xbf16>
    %10 = arith.truncf %8 : vector<256x256xf32> to vector<256x256xbf16>
    %cst_8 = arith.constant dense<0.000000e+00> : vector<128x256xf32>
    %11 = tpu.matmul %9, %10, %cst_8 {dimension_numbers = #tpu.dot_dimension_numbers<[1], [0], [0], [1], [0, 0, 1, 1], [], []>} : vector<128x256xbf16>, vector<256x256xbf16>, vector<128x256xf32> -> vector<128x256xf32>
    %c0_9 = arith.constant 0 : index
    %c0_10 = arith.constant 0 : index
    %12 = vector.load %arg5[%c0_9, %c0_10] : memref<128x1xf32, #tpu.memory_space<vmem>>, vector<128x1xf32>
    %13 = vector.broadcast %12 : vector<128x1xf32> to vector<128x256xf32>
    %14 = arith.addf %11, %13 : vector<128x256xf32>
    %cst_11 = arith.constant 0.000000e+00 : f32
    %15 = vector.broadcast %cst_11 : f32 to vector<128x256xf32>
    %16 = arith.maximumf %14, %15 : vector<128x256xf32>
    %c0_12 = arith.constant 0 : index
    %c0_13 = arith.constant 0 : index
    %17 = vector.load %arg6[%c0_12, %c0_13] : memref<128x128xbf16, #tpu.memory_space<vmem>>, vector<128x128xbf16>
    %18 = arith.truncf %16 : vector<128x256xf32> to vector<128x256xbf16>
    %cst_14 = arith.constant dense<0.000000e+00> : vector<128x256xf32>
    %19 = tpu.matmul %17, %18, %cst_14 {dimension_numbers = #tpu.dot_dimension_numbers<[1], [0], [0], [1], [0, 0, 1, 1], [], []>} : vector<128x128xbf16>, vector<128x256xbf16>, vector<128x256xf32> -> vector<128x256xf32>
    %c0_15 = arith.constant 0 : index
    %c0_16 = arith.constant 0 : index
    %20 = vector.load %arg7[%c0_15, %c0_16] : memref<128x1xf32, #tpu.memory_space<vmem>>, vector<128x1xf32>
    %21 = vector.broadcast %20 : vector<128x1xf32> to vector<128x256xf32>
    %22 = arith.addf %19, %21 : vector<128x256xf32>
    %cst_17 = arith.constant 0.000000e+00 : f32
    %23 = vector.broadcast %cst_17 : f32 to vector<128x256xf32>
    %24 = arith.maximumf %22, %23 : vector<128x256xf32>
    %c0_18 = arith.constant 0 : index
    %c0_19 = arith.constant 0 : index
    %25 = vector.load %arg8[%c0_18, %c0_19] : memref<6x128xbf16, #tpu.memory_space<vmem>>, vector<6x128xbf16>
    %26 = arith.truncf %24 : vector<128x256xf32> to vector<128x256xbf16>
    %cst_20 = arith.constant dense<0.000000e+00> : vector<6x256xf32>
    %27 = tpu.matmul %25, %26, %cst_20 {dimension_numbers = #tpu.dot_dimension_numbers<[1], [0], [0], [1], [0, 0, 1, 1], [], []>} : vector<6x128xbf16>, vector<128x256xbf16>, vector<6x256xf32> -> vector<6x256xf32>
    %c0_21 = arith.constant 0 : index
    %c0_22 = arith.constant 0 : index
    %28 = vector.load %arg9[%c0_21, %c0_22] : memref<6x1xf32, #tpu.memory_space<vmem>>, vector<6x1xf32>
    %29 = vector.broadcast %28 : vector<6x1xf32> to vector<6x256xf32>
    %30 = arith.addf %27, %29 : vector<6x256xf32>
    %c0_23 = arith.constant 0 : index
    %c0_24 = arith.constant 0 : index
    %31 = vector.load %arg10[%c0_23, %c0_24] : memref<6x256xf32, #tpu.memory_space<vmem>>, vector<6x256xf32>
    tpu.vector_store %arg10[%c0_23, %c0_24], %30 {strides = array<i32>} : memref<6x256xf32, #tpu.memory_space<vmem>>, vector<6x256xf32>,
    return
  }
  func.func @transform_0(%arg0: i32) -> (i32, i32) {
    %c0_i32 = arith.constant 0 : i32
    %c0_i32_0 = arith.constant 0 : i32
    return %arg0, %c0_i32 : i32, i32
  }
  func.func @transform_1(%arg0: i32) -> (i32, i32) {
    %c0_i32 = arith.constant 0 : i32
    %c0_i32_0 = arith.constant 0 : i32
    %c0_i32_1 = arith.constant 0 : i32
    return %c0_i32, %c0_i32_0 : i32, i32
  }
  func.func @transform_2(%arg0: i32) -> (i32, i32) {
    %c0_i32 = arith.constant 0 : i32
    %c0_i32_0 = arith.constant 0 : i32
    %c0_i32_1 = arith.constant 0 : i32
    return %c0_i32, %c0_i32_0 : i32, i32
  }
  func.func @transform_3(%arg0: i32) -> (i32, i32) {
    %c0_i32 = arith.constant 0 : i32
    %c0_i32_0 = arith.constant 0 : i32
    %c0_i32_1 = arith.constant 0 : i32
    return %c0_i32, %c0_i32_0 : i32, i32
  }
  func.func @transform_4(%arg0: i32) -> (i32, i32) {
    %c0_i32 = arith.constant 0 : i32
    %c0_i32_0 = arith.constant 0 : i32
    %c0_i32_1 = arith.constant 0 : i32
    return %c0_i32, %c0_i32_0 : i32, i32
  }
  func.func @transform_5(%arg0: i32) -> (i32, i32) {
    %c0_i32 = arith.constant 0 : i32
    %c0_i32_0 = arith.constant 0 : i32
    %c0_i32_1 = arith.constant 0 : i32
    return %c0_i32, %c0_i32_0 : i32, i32
  }
  func.func @transform_6(%arg0: i32) -> (i32, i32) {
    %c0_i32 = arith.constant 0 : i32
    %c0_i32_0 = arith.constant 0 : i32
    %c0_i32_1 = arith.constant 0 : i32
    return %c0_i32, %c0_i32_0 : i32, i32
  }
  func.func @transform_7(%arg0: i32) -> (i32, i32) {
    %c0_i32 = arith.constant 0 : i32
    %c0_i32_0 = arith.constant 0 : i32
    %c0_i32_1 = arith.constant 0 : i32
    return %c0_i32, %c0_i32_0 : i32, i32
  }
  func.func @transform_8(%arg0: i32) -> (i32, i32) {
    %c0_i32 = arith.constant 0 : i32
    %c0_i32_0 = arith.constant 0 : i32
    %c0_i32_1 = arith.constant 0 : i32
    return %c0_i32, %c0_i32_0 : i32, i32
  }
  func.func @transform_9(%arg0: i32) -> (i32, i32) {
    %c0_i32 = arith.constant 0 : i32
    %c0_i32_0 = arith.constant 0 : i32
    return %c0_i32, %arg0 : i32, i32
  }
}

</mosaic_0001>

<llo_original>
// kernel: tpu_custom_call.1
$region0: #{tpu_custom_call.1}
  #allocation0 [shape = 'u32[]', space=smem, size = 0x4, offset = 0x4, fixed_abs, tag = 'smem constant byte address 0x4 - core index']
  #allocation1 [shape = 'u32[144,128]{1,0:T(1,128)}', space=vmem, size = 0x12000, scoped, tag = 'internal scratch']
  %s0 = inlined_call_operand.vmem [shape: f32[256,6], index: 0, kind: input, shape index: {}]
  %s1 = inlined_call_operand.vmem [shape: bf16[256,6], index: 1, kind: input, shape index: {}]
  %s2 = inlined_call_operand.vmem [shape: f32[256,1], index: 2, kind: input, shape index: {}]
  %s3 = inlined_call_operand.vmem [shape: bf16[128,256], index: 3, kind: input, shape index: {}]
  %s4 = inlined_call_operand.vmem [shape: f32[128,1], index: 4, kind: input, shape index: {}]
  %s5 = inlined_call_operand.vmem [shape: bf16[128,128], index: 5, kind: input, shape index: {}]
  %s6 = inlined_call_operand.vmem [shape: f32[128,1], index: 6, kind: input, shape index: {}]
  %s7 = inlined_call_operand.vmem [shape: bf16[6,128], index: 7, kind: input, shape index: {}]
  %s8 = inlined_call_operand.vmem [shape: f32[6,1], index: 8, kind: input, shape index: {}]
  %s9 = inlined_call_operand.hbm [shape: f32[6,256], index: 9, kind: output, shape index: {}]
  %s10 = sld [smem:[#allocation0]]
  $region46: #{tpu_custom_call.1} parent=0
    _
  %s12 = ssub.s32 1, %s10
  %s13 = scalar_select 0, %s12, %s10
  $region1: #{tpu_custom_call.1} parent=0
    #allocation2 [shape = 'u8[8192]{0}', space=vmem, size = 0x2000, scoped, tag = 'output window, operand 0, single buffered']
    #allocation3 [shape = 's32[1]{0}', space=sflag, size = 0x4, scoped, tag = 'scoped memory for tpu_custom_call.1']
    %14 = vsyncpa [#allocation3], 0
    // Predicated region
    $region2: #{tpu_custom_call.1} parent=1 // pred_check
      _
    $region3: #{tpu_custom_call.1} parent=1 // pred_check_branch
      %16 = sbr.rel (0) target = $region5
    $region4: #{tpu_custom_call.1} parent=1 // pred_region
      _
    $region5: #{tpu_custom_call.1} parent=1 // pred_fallthru
      _
    // Predicated region
    $region6: #{tpu_custom_call.1} parent=1 // pred_check
      _
    $region7: #{tpu_custom_call.1} parent=1 // pred_check_branch
      %18 = sbr.rel (0) target = $region9
    $region8: #{tpu_custom_call.1} parent=1 // pred_region
      _
    $region9: #{tpu_custom_call.1} parent=1 // pred_fallthru
      _
    // Predicated region
    $region10: #{tpu_custom_call.1} parent=1 // pred_check
      _
    $region11: #{tpu_custom_call.1} parent=1 // pred_check_branch
      %20 = sbr.rel (0) target = $region13
    $region12: #{tpu_custom_call.1} parent=1 // pred_region
      _
    $region13: #{tpu_custom_call.1} parent=1 // pred_fallthru
      _
    // Predicated region
    $region14: #{tpu_custom_call.1} parent=1 // pred_check
      _
    $region15: #{tpu_custom_call.1} parent=1 // pred_check_branch
      %22 = sbr.rel (0) target = $region17
    $region16: #{tpu_custom_call.1} parent=1 // pred_region
      _
    $region17: #{tpu_custom_call.1} parent=1 // pred_fallthru
      _
    // Predicated region
    $region18: #{tpu_custom_call.1} parent=1 // pred_check
      _
    $region19: #{tpu_custom_call.1} parent=1 // pred_check_branch
      %24 = sbr.rel (0) target = $region21
    $region20: #{tpu_custom_call.1} parent=1 // pred_region
      _
    $region21: #{tpu_custom_call.1} parent=1 // pred_fallthru
      _
    // Predicated region
    $region22: #{tpu_custom_call.1} parent=1 // pred_check
      _
    $region23: #{tpu_custom_call.1} parent=1 // pred_check_branch
      %26 = sbr.rel (0) target = $region25
    $region24: #{tpu_custom_call.1} parent=1 // pred_region
      _
    $region25: #{tpu_custom_call.1} parent=1 // pred_fallthru
      _
    // Predicated region
    $region26: #{tpu_custom_call.1} parent=1 // pred_check
      _
    $region27: #{tpu_custom_call.1} parent=1 // pred_check_branch
      %28 = sbr.rel (0) target = $region29
    $region28: #{tpu_custom_call.1} parent=1 // pred_region
      _
    $region29: #{tpu_custom_call.1} parent=1 // pred_fallthru
      _
    // Predicated region
    $region30: #{tpu_custom_call.1} parent=1 // pred_check
      _
    $region31: #{tpu_custom_call.1} parent=1 // pred_check_branch
      %30 = sbr.rel (0) target = $region33
    $region32: #{tpu_custom_call.1} parent=1 // pred_region
      _
    $region33: #{tpu_custom_call.1} parent=1 // pred_fallthru
      _
    // Predicated region
    $region34: #{tpu_custom_call.1} parent=1 // pred_check
      _
    $region35: #{tpu_custom_call.1} parent=1 // pred_check_branch
      %32 = sbr.rel (0) target = $region37
    $region36: #{tpu_custom_call.1} parent=1 // pred_region
      _
    $region37: #{tpu_custom_call.1} parent=1 // pred_fallthru
      _
    %v34 = vld [vmem:[%s0] sm:$0xff]
    %v35 = vld [vmem:[%s0 + $0x8] sm:$0xff]
    %v36 = vld [vmem:[%s0 + $0x10] sm:$0xff]
    %v37 = vld [vmem:[%s0 + $0x18] sm:$0xff]
    %v38 = vld [vmem:[%s0 + $0x20] sm:$0xff]
    %v39 = vld [vmem:[%s0 + $0x28] sm:$0xff]
    %v40 = vld [vmem:[%s0 + $0x30] sm:$0xff]
    %v41 = vld [vmem:[%s0 + $0x38] sm:$0xff]
    %v42 = vld [vmem:[%s0 + $0x40] sm:$0xff]
    %v43 = vld [vmem:[%s0 + $0x48] sm:$0xff]
    %v44 = vld [vmem:[%s0 + $0x50] sm:$0xff]
    %v45 = vld [vmem:[%s0 + $0x58] sm:$0xff]
    %v46 = vld [vmem:[%s0 + $0x60] sm:$0xff]
    %v47 = vld [vmem:[%s0 + $0x68] sm:$0xff]
    %v48 = vld [vmem:[%s0 + $0x70] sm:$0xff]
    %v49 = vld [vmem:[%s0 + $0x78] sm:$0xff]
    %v50 = vld [vmem:[%s0 + $0x80] sm:$0xff]
    %v51 = vld [vmem:[%s0 + $0x88] sm:$0xff]
    %v52 = vld [vmem:[%s0 + $0x90] sm:$0xff]
    %v53 = vld [vmem:[%s0 + $0x98] sm:$0xff]
    %v54 = vld [vmem:[%s0 + $0xa0] sm:$0xff]
    %v55 = vld [vmem:[%s0 + $0xa8] sm:$0xff]
    %v56 = vld [vmem:[%s0 + $0xb0] sm:$0xff]
    %v57 = vld [vmem:[%s0 + $0xb8] sm:$0xff]
    %v58 = vld [vmem:[%s0 + $0xc0] sm:$0xff]
    %v59 = vld [vmem:[%s0 + $0xc8] sm:$0xff]
    %v60 = vld [vmem:[%s0 + $0xd0] sm:$0xff]
    %v61 = vld [vmem:[%s0 + $0xd8] sm:$0xff]
    %v62 = vld [vmem:[%s0 + $0xe0] sm:$0xff]
    %v63 = vld [vmem:[%s0 + $0xe8] sm:$0xff]
    %v64 = vld [vmem:[%s0 + $0xf0] sm:$0xff]
    %v65 = vld [vmem:[%s0 + $0xf8] sm:$0xff]
    %v66 = vpack.c.bf16 %v35, %v34
    %v67 = vpack.c.bf16 %v37, %v36
    %v68 = vpack.c.bf16 %v39, %v38
    %v69 = vpack.c.bf16 %v41, %v40
    %v70 = vpack.c.bf16 %v43, %v42
    %v71 = vpack.c.bf16 %v45, %v44
    %v72 = vpack.c.bf16 %v47, %v46
    %v73 = vpack.c.bf16 %v49, %v48
    %v74 = vpack.c.bf16 %v51, %v50
    %v75 = vpack.c.bf16 %v53, %v52
    %v76 = vpack.c.bf16 %v55, %v54
    %v77 = vpack.c.bf16 %v57, %v56
    %v78 = vpack.c.bf16 %v59, %v58
    %v79 = vpack.c.bf16 %v61, %v60
    %v80 = vpack.c.bf16 %v63, %v62
    %v81 = vpack.c.bf16 %v65, %v64
    %v82 = vld [vmem:[%s1] sm:$0xf]
    %v83 = vld [vmem:[%s1 + $0x4] sm:$0xf]
    %v84 = vld [vmem:[%s1 + $0x8] sm:$0xf]
    %v85 = vld [vmem:[%s1 + $0xc] sm:$0xf]
    %v86 = vld [vmem:[%s1 + $0x10] sm:$0xf]
    %v87 = vld [vmem:[%s1 + $0x14] sm:$0xf]
    %v88 = vld [vmem:[%s1 + $0x18] sm:$0xf]
    %v89 = vld [vmem:[%s1 + $0x1c] sm:$0xf]
    %v90 = vld [vmem:[%s1 + $0x20] sm:$0xf]
    %v91 = vld [vmem:[%s1 + $0x24] sm:$0xf]
    %v92 = vld [vmem:[%s1 + $0x28] sm:$0xf]
    %v93 = vld [vmem:[%s1 + $0x2c] sm:$0xf]
    %v94 = vld [vmem:[%s1 + $0x30] sm:$0xf]
    %v95 = vld [vmem:[%s1 + $0x34] sm:$0xf]
    %v96 = vld [vmem:[%s1 + $0x38] sm:$0xf]
    %v97 = vld [vmem:[%s1 + $0x3c] sm:$0xf]
    %v98 = vld [vmem:[%s1 + $0x40] sm:$0xf]
    %v99 = vld [vmem:[%s1 + $0x44] sm:$0xf]
    %v100 = vld [vmem:[%s1 + $0x48] sm:$0xf]
    %v101 = vld [vmem:[%s1 + $0x4c] sm:$0xf]
    %v102 = vld [vmem:[%s1 + $0x50] sm:$0xf]
    %v103 = vld [vmem:[%s1 + $0x54] sm:$0xf]
    %v104 = vld [vmem:[%s1 + $0x58] sm:$0xf]
    %v105 = vld [vmem:[%s1 + $0x5c] sm:$0xf]
    %v106 = vld [vmem:[%s1 + $0x60] sm:$0xf]
    %v107 = vld [vmem:[%s1 + $0x64] sm:$0xf]
    %v108 = vld [vmem:[%s1 + $0x68] sm:$0xf]
    %v109 = vld [vmem:[%s1 + $0x6c] sm:$0xf]
    %v110 = vld [vmem:[%s1 + $0x70] sm:$0xf]
    %v111 = vld [vmem:[%s1 + $0x74] sm:$0xf]
    %v112 = vld [vmem:[%s1 + $0x78] sm:$0xf]
    %v113 = vld [vmem:[%s1 + $0x7c] sm:$0xf]
    %v114 = vld [vmem:[%s2] sm:$0xff]
    %v115 = vld [vmem:[%s2 + $0x8] sm:$0xff]
    %v116 = vld [vmem:[%s2 + $0x10] sm:$0xff]
    %v117 = vld [vmem:[%s2 + $0x18] sm:$0xff]
    %v118 = vld [vmem:[%s2 + $0x20] sm:$0xff]
    %v119 = vld [vmem:[%s2 + $0x28] sm:$0xff]
    %v120 = vld [vmem:[%s2 + $0x30] sm:$0xff]
    %v121 = vld [vmem:[%s2 + $0x38] sm:$0xff]
    %v122 = vld [vmem:[%s2 + $0x40] sm:$0xff]
    %v123 = vld [vmem:[%s2 + $0x48] sm:$0xff]
    %v124 = vld [vmem:[%s2 + $0x50] sm:$0xff]
    %v125 = vld [vmem:[%s2 + $0x58] sm:$0xff]
    %v126 = vld [vmem:[%s2 + $0x60] sm:$0xff]
    %v127 = vld [vmem:[%s2 + $0x68] sm:$0xff]
    %v128 = vld [vmem:[%s2 + $0x70] sm:$0xff]
    %v129 = vld [vmem:[%s2 + $0x78] sm:$0xff]
    %v130 = vld [vmem:[%s2 + $0x80] sm:$0xff]
    %v131 = vld [vmem:[%s2 + $0x88] sm:$0xff]
    %v132 = vld [vmem:[%s2 + $0x90] sm:$0xff]
    %v133 = vld [vmem:[%s2 + $0x98] sm:$0xff]
    %v134 = vld [vmem:[%s2 + $0xa0] sm:$0xff]
    %v135 = vld [vmem:[%s2 + $0xa8] sm:$0xff]
    %v136 = vld [vmem:[%s2 + $0xb0] sm:$0xff]
    %v137 = vld [vmem:[%s2 + $0xb8] sm:$0xff]
    %v138 = vld [vmem:[%s2 + $0xc0] sm:$0xff]
    %v139 = vld [vmem:[%s2 + $0xc8] sm:$0xff]
    %v140 = vld [vmem:[%s2 + $0xd0] sm:$0xff]
    %v141 = vld [vmem:[%s2 + $0xd8] sm:$0xff]
    %v142 = vld [vmem:[%s2 + $0xe0] sm:$0xff]
    %v143 = vld [vmem:[%s2 + $0xe8] sm:$0xff]
    %v144 = vld [vmem:[%s2 + $0xf0] sm:$0xff]
    %v145 = vld [vmem:[%s2 + $0xf8] sm:$0xff]
    %147 = vset.pattern.permute.xlu0 0
    %148 = vperm.xlu0 %147, %v114
    %v149 = vpop.permute.xlu0 %148
    %152 = vset.pattern.permute.xlu0 0
    %153 = vperm.xlu0 %152, %v115
    %v154 = vpop.permute.xlu0 %153
    %157 = vset.pattern.permute.xlu0 0
    %158 = vperm.xlu0 %157, %v116
    %v159 = vpop.permute.xlu0 %158
    %162 = vset.pattern.permute.xlu0 0
    %163 = vperm.xlu0 %162, %v117
    %v164 = vpop.permute.xlu0 %163
    %167 = vset.pattern.permute.xlu0 0
    %168 = vperm.xlu0 %167, %v118
    %v169 = vpop.permute.xlu0 %168
    %172 = vset.pattern.permute.xlu0 0
    %173 = vperm.xlu0 %172, %v119
    %v174 = vpop.permute.xlu0 %173
    %177 = vset.pattern.permute.xlu0 0
    %178 = vperm.xlu0 %177, %v120
    %v179 = vpop.permute.xlu0 %178
    %182 = vset.pattern.permute.xlu0 0
    %183 = vperm.xlu0 %182, %v121
    %v184 = vpop.permute.xlu0 %183
    %187 = vset.pattern.permute.xlu0 0
    %188 = vperm.xlu0 %187, %v122
    %v189 = vpop.permute.xlu0 %188
    %192 = vset.pattern.permute.xlu0 0
    %193 = vperm.xlu0 %192, %v123
    %v194 = vpop.permute.xlu0 %193
    %197 = vset.pattern.permute.xlu0 0
    %198 = vperm.xlu0 %197, %v124
    %v199 = vpop.permute.xlu0 %198
    %202 = vset.pattern.permute.xlu0 0
    %203 = vperm.xlu0 %202, %v125
    %v204 = vpop.permute.xlu0 %203
    %207 = vset.pattern.permute.xlu0 0
    %208 = vperm.xlu0 %207, %v126
    %v209 = vpop.permute.xlu0 %208
    %212 = vset.pattern.permute.xlu0 0
    %213 = vperm.xlu0 %212, %v127
    %v214 = vpop.permute.xlu0 %213
    %217 = vset.pattern.permute.xlu0 0
    %218 = vperm.xlu0 %217, %v128
    %v219 = vpop.permute.xlu0 %218
    %222 = vset.pattern.permute.xlu0 0
    %223 = vperm.xlu0 %222, %v129
    %v224 = vpop.permute.xlu0 %223
    %227 = vset.pattern.permute.xlu0 0
    %228 = vperm.xlu0 %227, %v130
    %v229 = vpop.permute.xlu0 %228
    %232 = vset.pattern.permute.xlu0 0
    %233 = vperm.xlu0 %232, %v131
    %v234 = vpop.permute.xlu0 %233
    %237 = vset.pattern.permute.xlu0 0
    %238 = vperm.xlu0 %237, %v132
    %v239 = vpop.permute.xlu0 %238
    %242 = vset.pattern.permute.xlu0 0
    %243 = vperm.xlu0 %242, %v133
    %v244 = vpop.permute.xlu0 %243
    %247 = vset.pattern.permute.xlu0 0
    %248 = vperm.xlu0 %247, %v134
    %v249 = vpop.permute.xlu0 %248
    %252 = vset.pattern.permute.xlu0 0
    %253 = vperm.xlu0 %252, %v135
    %v254 = vpop.permute.xlu0 %253
    %257 = vset.pattern.permute.xlu0 0
    %258 = vperm.xlu0 %257, %v136
    %v259 = vpop.permute.xlu0 %258
    %262 = vset.pattern.permute.xlu0 0
    %263 = vperm.xlu0 %262, %v137
    %v264 = vpop.permute.xlu0 %263
    %267 = vset.pattern.permute.xlu0 0
    %268 = vperm.xlu0 %267, %v138
    %v269 = vpop.permute.xlu0 %268
    %272 = vset.pattern.permute.xlu0 0
    %273 = vperm.xlu0 %272, %v139
    %v274 = vpop.permute.xlu0 %273
    %277 = vset.pattern.permute.xlu0 0
    %278 = vperm.xlu0 %277, %v140
    %v279 = vpop.permute.xlu0 %278
    %282 = vset.pattern.permute.xlu0 0
    %283 = vperm.xlu0 %282, %v141
    %v284 = vpop.permute.xlu0 %283
    %287 = vset.pattern.permute.xlu0 0
    %288 = vperm.xlu0 %287, %v142
    %v289 = vpop.permute.xlu0 %288
    %292 = vset.pattern.permute.xlu0 0
    %293 = vperm.xlu0 %292, %v143
    %v294 = vpop.permute.xlu0 %293
    %297 = vset.pattern.permute.xlu0 0
    %298 = vperm.xlu0 %297, %v144
    %v299 = vpop.permute.xlu0 %298
    %302 = vset.pattern.permute.xlu0 0
    %303 = vperm.xlu0 %302, %v145
    %v304 = vpop.permute.xlu0 %303
    %v338 = vunpack.c.l.b16 %v82
    %v339 = vunpack.c.l.b16 %v83
    %v340 = vunpack.c.l.b16 %v84
    %v341 = vunpack.c.l.b16 %v85
    %v342 = vunpack.c.l.b16 %v86
    %v343 = vunpack.c.l.b16 %v87
    %v344 = vunpack.c.l.b16 %v88
    %v345 = vunpack.c.l.b16 %v89
    %v346 = vunpack.c.l.b16 %v90
    %v347 = vunpack.c.l.b16 %v91
    %v348 = vunpack.c.l.b16 %v92
    %v349 = vunpack.c.l.b16 %v93
    %v350 = vunpack.c.l.b16 %v94
    %v351 = vunpack.c.l.b16 %v95
    %v352 = vunpack.c.l.b16 %v96
    %v353 = vunpack.c.l.b16 %v97
    %v354 = vunpack.c.l.b16 %v98
    %v355 = vunpack.c.l.b16 %v99
    %v356 = vunpack.c.l.b16 %v100
    %v357 = vunpack.c.l.b16 %v101
    %v358 = vunpack.c.l.b16 %v102
    %v359 = vunpack.c.l.b16 %v103
    %v360 = vunpack.c.l.b16 %v104
    %v361 = vunpack.c.l.b16 %v105
    %v362 = vunpack.c.l.b16 %v106
    %v363 = vunpack.c.l.b16 %v107
    %v364 = vunpack.c.l.b16 %v108
    %v365 = vunpack.c.l.b16 %v109
    %v366 = vunpack.c.l.b16 %v110
    %v367 = vunpack.c.l.b16 %v111
    %v368 = vunpack.c.l.b16 %v112
    %v369 = vunpack.c.l.b16 %v113
    %v370 = vpack.c.b16 %v339, %v338
    %v371 = vpack.c.b16 %v341, %v340
    %v372 = vpack.c.b16 %v343, %v342
    %v373 = vpack.c.b16 %v345, %v344
    %v374 = vpack.c.b16 %v347, %v346
    %v375 = vpack.c.b16 %v349, %v348
    %v376 = vpack.c.b16 %v351, %v350
    %v377 = vpack.c.b16 %v353, %v352
    %v378 = vpack.c.b16 %v355, %v354
    %v379 = vpack.c.b16 %v357, %v356
    %v380 = vpack.c.b16 %v359, %v358
    %v381 = vpack.c.b16 %v361, %v360
    %v382 = vpack.c.b16 %v363, %v362
    %v383 = vpack.c.b16 %v365, %v364
    %v384 = vpack.c.b16 %v367, %v366
    %v385 = vpack.c.b16 %v369, %v368
    %vm386 = vcmask 48128
    %v388 = vsel %vm386, %v370, 0
    %v391 = vsel %vm386, %v371, 0
    %v394 = vsel %vm386, %v372, 0
    %v397 = vsel %vm386, %v373, 0
    %v400 = vsel %vm386, %v374, 0
    %v403 = vsel %vm386, %v375, 0
    %v406 = vsel %vm386, %v376, 0
    %v409 = vsel %vm386, %v377, 0
    %v412 = vsel %vm386, %v378, 0
    %v415 = vsel %vm386, %v379, 0
    %v418 = vsel %vm386, %v380, 0
    %v421 = vsel %vm386, %v381, 0
    %v424 = vsel %vm386, %v382, 0
    %v427 = vsel %vm386, %v383, 0
    %v430 = vsel %vm386, %v384, 0
    %v433 = vsel %vm386, %v385, 0
    %v436 = vsel %vm386, %v66, 0
    %v439 = vsel %vm386, %v67, 0
    %v442 = vsel %vm386, %v68, 0
    %v445 = vsel %vm386, %v69, 0
    %v448 = vsel %vm386, %v70, 0
    %v451 = vsel %vm386, %v71, 0
    %v454 = vsel %vm386, %v72, 0
    %v457 = vsel %vm386, %v73, 0
    %v460 = vsel %vm386, %v74, 0
    %v463 = vsel %vm386, %v75, 0
    %v466 = vsel %vm386, %v76, 0
    %v469 = vsel %vm386, %v77, 0
    %v472 = vsel %vm386, %v78, 0
    %v475 = vsel %vm386, %v79, 0
    %v478 = vsel %vm386, %v80, 0
    %v481 = vsel %vm386, %v81, 0
    %483 = vmatprep.subr.bf16.mxu0 0
    %484 = vmatpush1.bf16.xpose.msra.mxu0 %v436
    %485 = vmatprep.subr.bf16.mxu0 0
    %486 = vmatpush1.bf16.xpose.msra.mxu0 %v439
    %487 = vmatprep.subr.bf16.mxu0 0
    %488 = vmatpush1.bf16.xpose.msra.mxu0 %v442
    %489 = vmatprep.subr.bf16.mxu0 0
    %490 = vmatpush1.bf16.xpose.msra.mxu0 %v445
    %491 = vmatprep.subr.bf16.mxu0 0
    %492 = vmatpush1.bf16.xpose.msra.mxu0 %v448
    %493 = vmatprep.subr.bf16.mxu0 0
    %494 = vmatpush1.bf16.xpose.msra.mxu0 %v451
    %495 = vmatprep.subr.bf16.mxu0 0
    %496 = vmatpush1.bf16.xpose.msra.mxu0 %v454
    %497 = vmatprep.subr.bf16.mxu0 0
    %498 = vmatpush1.bf16.xpose.msra.mxu0 %v457
    %499 = vmatprep.subr.bf16.mxu0 0
    %500 = vmatpush1.bf16.xpose.msra.mxu0 %v460
    %501 = vmatprep.subr.bf16.mxu0 0
    %502 = vmatpush1.bf16.xpose.msra.mxu0 %v463
    %503 = vmatprep.subr.bf16.mxu0 0
    %504 = vmatpush1.bf16.xpose.msra.mxu0 %v466
    %505 = vmatprep.subr.bf16.mxu0 0
    %506 = vmatpush1.bf16.xpose.msra.mxu0 %v469
    %507 = vmatprep.subr.bf16.mxu0 0
    %508 = vmatpush1.bf16.xpose.msra.mxu0 %v472
    %509 = vmatprep.subr.bf16.mxu0 0
    %510 = vmatpush1.bf16.xpose.msra.mxu0 %v475
    %511 = vmatprep.subr.bf16.mxu0 0
    %512 = vmatpush1.bf16.xpose.msra.mxu0 %v478
    %513 = vmatprep.subr.bf16.mxu0 0
    %514 = vmatpush1.bf16.xpose.msra.mxu0 %v481
    %515 = vmatprep.mubr.bf16.mxu0 0
    %516 = vmatmul.mubr.bf16.gmra.mrb[0].mxu0 %v388
    %v517 = vpop.f32.mrb[0].mxu0
    %v518 = vadd.f32 %v149, %v517
    %v519 = vpop.f32.mrb[0].mxu0
    %v520 = vadd.f32 %v149, %v519
    %v521 = vpop.f32.mrb[0].mxu0
    %v522 = vadd.f32 %v154, %v521
    %v523 = vpop.f32.mrb[0].mxu0
    %v524 = vadd.f32 %v154, %v523
    %525 = vmatprep.mubr.bf16.mxu0 0
    %526 = vmatmul.mubr.bf16.gmra.mrb[0].mxu0 %v391
    %v527 = vpop.f32.mrb[0].mxu0
    %v528 = vadd.f32 %v159, %v527
    %v529 = vpop.f32.mrb[0].mxu0
    %v530 = vadd.f32 %v159, %v529
    %v531 = vpop.f32.mrb[0].mxu0
    %v532 = vadd.f32 %v164, %v531
    %v533 = vpop.f32.mrb[0].mxu0
    %v534 = vadd.f32 %v164, %v533
    %535 = vmatprep.mubr.bf16.mxu0 0
    %536 = vmatmul.mubr.bf16.gmra.mrb[0].mxu0 %v394
    %v537 = vpop.f32.mrb[0].mxu0
    %v538 = vadd.f32 %v169, %v537
    %v539 = vpop.f32.mrb[0].mxu0
    %v540 = vadd.f32 %v169, %v539
    %v541 = vpop.f32.mrb[0].mxu0
    %v542 = vadd.f32 %v174, %v541
    %v543 = vpop.f32.mrb[0].mxu0
    %v544 = vadd.f32 %v174, %v543
    %545 = vmatprep.mubr.bf16.mxu0 0
    %546 = vmatmul.mubr.bf16.gmra.mrb[0].mxu0 %v397
    %v547 = vpop.f32.mrb[0].mxu0
    %v548 = vadd.f32 %v179, %v547
    %v549 = vpop.f32.mrb[0].mxu0
    %v550 = vadd.f32 %v179, %v549
    %v551 = vpop.f32.mrb[0].mxu0
    %v552 = vadd.f32 %v184, %v551
    %v553 = vpop.f32.mrb[0].mxu0
    %v554 = vadd.f32 %v184, %v553
    %555 = vmatprep.mubr.bf16.mxu0 0
    %556 = vmatmul.mubr.bf16.gmra.mrb[0].mxu0 %v400
    %v557 = vpop.f32.mrb[0].mxu0
    %v558 = vadd.f32 %v189, %v557
    %v559 = vpop.f32.mrb[0].mxu0
    %v560 = vadd.f32 %v189, %v559
    %v561 = vpop.f32.mrb[0].mxu0
    %v562 = vadd.f32 %v194, %v561
    %v563 = vpop.f32.mrb[0].mxu0
    %v564 = vadd.f32 %v194, %v563
    %565 = vmatprep.mubr.bf16.mxu0 0
    %566 = vmatmul.mubr.bf16.gmra.mrb[0].mxu0 %v403
    %v567 = vpop.f32.mrb[0].mxu0
    %v568 = vadd.f32 %v199, %v567
    %v569 = vpop.f32.mrb[0].mxu0
    %v570 = vadd.f32 %v199, %v569
    %v571 = vpop.f32.mrb[0].mxu0
    %v572 = vadd.f32 %v204, %v571
    %v573 = vpop.f32.mrb[0].mxu0
    %v574 = vadd.f32 %v204, %v573
    %575 = vmatprep.mubr.bf16.mxu0 0
    %576 = vmatmul.mubr.bf16.gmra.mrb[0].mxu0 %v406
    %v577 = vpop.f32.mrb[0].mxu0
    %v578 = vadd.f32 %v209, %v577
    %v579 = vpop.f32.mrb[0].mxu0
    %v580 = vadd.f32 %v209, %v579
    %v581 = vpop.f32.mrb[0].mxu0
    %v582 = vadd.f32 %v214, %v581
    %v583 = vpop.f32.mrb[0].mxu0
    %v584 = vadd.f32 %v214, %v583
    %585 = vmatprep.mubr.bf16.mxu0 0
    %586 = vmatmul.mubr.bf16.gmra.mrb[0].mxu0 %v409
    %v587 = vpop.f32.mrb[0].mxu0
    %v588 = vadd.f32 %v219, %v587
    %v589 = vpop.f32.mrb[0].mxu0
    %v590 = vadd.f32 %v219, %v589
    %v591 = vpop.f32.mrb[0].mxu0
    %v592 = vadd.f32 %v224, %v591
    %v593 = vpop.f32.mrb[0].mxu0
    %v594 = vadd.f32 %v224, %v593
    %595 = vmatprep.mubr.bf16.mxu0 0
    %596 = vmatmul.mubr.bf16.gmra.mrb[0].mxu0 %v412
    %v597 = vpop.f32.mrb[0].mxu0
    %v598 = vadd.f32 %v229, %v597
    %v599 = vpop.f32.mrb[0].mxu0
    %v600 = vadd.f32 %v229, %v599
    %v601 = vpop.f32.mrb[0].mxu0
    %v602 = vadd.f32 %v234, %v601
    %v603 = vpop.f32.mrb[0].mxu0
    %v604 = vadd.f32 %v234, %v603
    %605 = vmatprep.mubr.bf16.mxu0 0
    %606 = vmatmul.mubr.bf16.gmra.mrb[0].mxu0 %v415
    %v607 = vpop.f32.mrb[0].mxu0
    %v608 = vadd.f32 %v239, %v607
    %v609 = vpop.f32.mrb[0].mxu0
    %v610 = vadd.f32 %v239, %v609
    %v611 = vpop.f32.mrb[0].mxu0
    %v612 = vadd.f32 %v244, %v611
    %v613 = vpop.f32.mrb[0].mxu0
    %v614 = vadd.f32 %v244, %v613
    %615 = vmatprep.mubr.bf16.mxu0 0
    %616 = vmatmul.mubr.bf16.gmra.mrb[0].mxu0 %v418
    %v617 = vpop.f32.mrb[0].mxu0
    %v618 = vadd.f32 %v249, %v617
    %v619 = vpop.f32.mrb[0].mxu0
    %v620 = vadd.f32 %v249, %v619
    %v621 = vpop.f32.mrb[0].mxu0
    %v622 = vadd.f32 %v254, %v621
    %v623 = vpop.f32.mrb[0].mxu0
    %v624 = vadd.f32 %v254, %v623
    %625 = vmatprep.mubr.bf16.mxu0 0
    %626 = vmatmul.mubr.bf16.gmra.mrb[0].mxu0 %v421
    %v627 = vpop.f32.mrb[0].mxu0
    %v628 = vadd.f32 %v259, %v627
    %v629 = vpop.f32.mrb[0].mxu0
    %v630 = vadd.f32 %v259, %v629
    %v631 = vpop.f32.mrb[0].mxu0
    %v632 = vadd.f32 %v264, %v631
    %v633 = vpop.f32.mrb[0].mxu0
    %v634 = vadd.f32 %v264, %v633
    %635 = vmatprep.mubr.bf16.mxu0 0
    %636 = vmatmul.mubr.bf16.gmra.mrb[0].mxu0 %v424
    %v637 = vpop.f32.mrb[0].mxu0
    %v638 = vadd.f32 %v269, %v637
    %v639 = vpop.f32.mrb[0].mxu0
    %v640 = vadd.f32 %v269, %v639
    %v641 = vpop.f32.mrb[0].mxu0
    %v642 = vadd.f32 %v274, %v641
    %v643 = vpop.f32.mrb[0].mxu0
    %v644 = vadd.f32 %v274, %v643
    %645 = vmatprep.mubr.bf16.mxu0 0
    %646 = vmatmul.mubr.bf16.gmra.mrb[0].mxu0 %v427
    %v647 = vpop.f32.mrb[0].mxu0
    %v648 = vadd.f32 %v279, %v647
    %v649 = vpop.f32.mrb[0].mxu0
    %v650 = vadd.f32 %v279, %v649
    %v651 = vpop.f32.mrb[0].mxu0
    %v652 = vadd.f32 %v284, %v651
    %v653 = vpop.f32.mrb[0].mxu0
    %v654 = vadd.f32 %v284, %v653
    %655 = vmatprep.mubr.bf16.mxu0 0
    %656 = vmatmul.mubr.bf16.gmra.mrb[0].mxu0 %v430
    %v657 = vpop.f32.mrb[0].mxu0
    %v658 = vadd.f32 %v289, %v657
    %v659 = vpop.f32.mrb[0].mxu0
    %v660 = vadd.f32 %v289, %v659
    %v661 = vpop.f32.mrb[0].mxu0
    %v662 = vadd.f32 %v294, %v661
    %v663 = vpop.f32.mrb[0].mxu0
    %v664 = vadd.f32 %v294, %v663
    %665 = vmatprep.mubr.bf16.mxu0 0
    %666 = vmatmul.mubr.bf16.gmra.mrb[0].mxu0 %v433
    %v667 = vpop.f32.mrb[0].mxu0
    %v668 = vadd.f32 %v299, %v667
    %v669 = vpop.f32.mrb[0].mxu0
    %v670 = vadd.f32 %v299, %v669
    %v671 = vpop.f32.mrb[0].mxu0
    %v672 = vadd.f32 %v304, %v671
    %v673 = vpop.f32.mrb[0].mxu0
    %v674 = vadd.f32 %v304, %v673
    %675 = vdwg.mxu0
    %v676 = vmax.f32 %v518, 0.0
    %v677 = vmax.f32 %v520, 0.0
    %v678 = vmax.f32 %v522, 0.0
    %v679 = vmax.f32 %v524, 0.0
    %v680 = vmax.f32 %v528, 0.0
    %v681 = vmax.f32 %v530, 0.0
    %v682 = vmax.f32 %v532, 0.0
    %v683 = vmax.f32 %v534, 0.0
    %v684 = vmax.f32 %v538, 0.0
    %v685 = vmax.f32 %v540, 0.0
    %v686 = vmax.f32 %v542, 0.0
    %v687 = vmax.f32 %v544, 0.0
    %v688 = vmax.f32 %v548, 0.0
    %v689 = vmax.f32 %v550, 0.0
    %v690 = vmax.f32 %v552, 0.0
    %v691 = vmax.f32 %v554, 0.0
    %v692 = vmax.f32 %v558, 0.0
    %v693 = vmax.f32 %v560, 0.0
    %v694 = vmax.f32 %v562, 0.0
    %v695 = vmax.f32 %v564, 0.0
    %v696 = vmax.f32 %v568, 0.0
    %v697 = vmax.f32 %v570, 0.0
    %v698 = vmax.f32 %v572, 0.0
    %v699 = vmax.f32 %v574, 0.0
    %v700 = vmax.f32 %v578, 0.0
    %v701 = vmax.f32 %v580, 0.0
    %v702 = vmax.f32 %v582, 0.0
    %v703 = vmax.f32 %v584, 0.0
    %v704 = vmax.f32 %v588, 0.0
    %v705 = vmax.f32 %v590, 0.0
    %v706 = vmax.f32 %v592, 0.0
    %v707 = vmax.f32 %v594, 0.0
    %v708 = vmax.f32 %v598, 0.0
    %v709 = vmax.f32 %v600, 0.0
    %v710 = vmax.f32 %v602, 0.0
    %v711 = vmax.f32 %v604, 0.0
    %v712 = vmax.f32 %v608, 0.0
    %v713 = vmax.f32 %v610, 0.0
    %v714 = vmax.f32 %v612, 0.0
    %v715 = vmax.f32 %v614, 0.0
    %v716 = vmax.f32 %v618, 0.0
    %v717 = vmax.f32 %v620, 0.0
    %v718 = vmax.f32 %v622, 0.0
    %v719 = vmax.f32 %v624, 0.0
    %v720 = vmax.f32 %v628, 0.0
    %v721 = vmax.f32 %v630, 0.0
    %v722 = vmax.f32 %v632, 0.0
    %v723 = vmax.f32 %v634, 0.0
    %v724 = vmax.f32 %v638, 0.0
    %v725 = vmax.f32 %v640, 0.0
    %v726 = vmax.f32 %v642, 0.0
    %v727 = vmax.f32 %v644, 0.0
    %v728 = vmax.f32 %v648, 0.0
    %v729 = vmax.f32 %v650, 0.0
    %v730 = vmax.f32 %v652, 0.0
    %v731 = vmax.f32 %v654, 0.0
    %v732 = vmax.f32 %v658, 0.0
    %v733 = vmax.f32 %v660, 0.0
    %v734 = vmax.f32 %v662, 0.0
    %v735 = vmax.f32 %v664, 0.0
    %v736 = vmax.f32 %v668, 0.0
    %v737 = vmax.f32 %v670, 0.0
    %v738 = vmax.f32 %v672, 0.0
    %v739 = vmax.f32 %v674, 0.0
    %v740 = vld [vmem:[%s3] sm:$0xff]
    %v741 = vld [vmem:[%s3 + $0x8] sm:$0xff]
    %v742 = vld [vmem:[%s3 + $0x10] sm:$0xff]
    %v743 = vld [vmem:[%s3 + $0x18] sm:$0xff]
    %v744 = vld [vmem:[%s3 + $0x20] sm:$0xff]
    %v745 = vld [vmem:[%s3 + $0x28] sm:$0xff]
    %v746 = vld [vmem:[%s3 + $0x30] sm:$0xff]
    %v747 = vld [vmem:[%s3 + $0x38] sm:$0xff]
    %v748 = vld [vmem:[%s3 + $0x40] sm:$0xff]
    %v749 = vld [vmem:[%s3 + $0x48] sm:$0xff]
    %v750 = vld [vmem:[%s3 + $0x50] sm:$0xff]
    %v751 = vld [vmem:[%s3 + $0x58] sm:$0xff]
    %v752 = vld [vmem:[%s3 + $0x60] sm:$0xff]
    %v753 = vld [vmem:[%s3 + $0x68] sm:$0xff]
    %v754 = vld [vmem:[%s3 + $0x70] sm:$0xff]
    %v755 = vld [vmem:[%s3 + $0x78] sm:$0xff]
    %v756 = vpack.c.bf16 %v678, %v676
    %v757 = vpack.c.bf16 %v679, %v677
    %v758 = vpack.c.bf16 %v682, %v680
    %v759 = vpack.c.bf16 %v683, %v681
    %v760 = vpack.c.bf16 %v686, %v684
    %v761 = vpack.c.bf16 %v687, %v685
    %v762 = vpack.c.bf16 %v690, %v688
    %v763 = vpack.c.bf16 %v691, %v689
    %v764 = vpack.c.bf16 %v694, %v692
    %v765 = vpack.c.bf16 %v695, %v693
    %v766 = vpack.c.bf16 %v698, %v696
    %v767 = vpack.c.bf16 %v699, %v697
    %v768 = vpack.c.bf16 %v702, %v700
    %v769 = vpack.c.bf16 %v703, %v701
    %v770 = vpack.c.bf16 %v706, %v704
    %v771 = vpack.c.bf16 %v707, %v705
    %v772 = vpack.c.bf16 %v710, %v708
    %v773 = vpack.c.bf16 %v711, %v709
    %v774 = vpack.c.bf16 %v714, %v712
    %v775 = vpack.c.bf16 %v715, %v713
    %v776 = vpack.c.bf16 %v718, %v716
    %v777 = vpack.c.bf16 %v719, %v717
    %v778 = vpack.c.bf16 %v722, %v720
    %v779 = vpack.c.bf16 %v723, %v721
    %v780 = vpack.c.bf16 %v726, %v724
    %v781 = vpack.c.bf16 %v727, %v725
    %v782 = vpack.c.bf16 %v730, %v728
    %v783 = vpack.c.bf16 %v731, %v729
    %v784 = vpack.c.bf16 %v734, %v732
    %v785 = vpack.c.bf16 %v735, %v733
    %v786 = vpack.c.bf16 %v738, %v736
    %v787 = vpack.c.bf16 %v739, %v737
    %v788 = vld [vmem:[%s4] sm:$0xff]
    %v789 = vld [vmem:[%s4 + $0x8] sm:$0xff]
    %v790 = vld [vmem:[%s4 + $0x10] sm:$0xff]
    %v791 = vld [vmem:[%s4 + $0x18] sm:$0xff]
    %v792 = vld [vmem:[%s4 + $0x20] sm:$0xff]
    %v793 = vld [vmem:[%s4 + $0x28] sm:$0xff]
    %v794 = vld [vmem:[%s4 + $0x30] sm:$0xff]
    %v795 = vld [vmem:[%s4 + $0x38] sm:$0xff]
    %v796 = vld [vmem:[%s4 + $0x40] sm:$0xff]
    %v797 = vld [vmem:[%s4 + $0x48] sm:$0xff]
    %v798 = vld [vmem:[%s4 + $0x50] sm:$0xff]
    %v799 = vld [vmem:[%s4 + $0x58] sm:$0xff]
    %v800 = vld [vmem:[%s4 + $0x60] sm:$0xff]
    %v801 = vld [vmem:[%s4 + $0x68] sm:$0xff]
    %v802 = vld [vmem:[%s4 + $0x70] sm:$0xff]
    %v803 = vld [vmem:[%s4 + $0x78] sm:$0xff]
    %805 = vset.pattern.permute.xlu0 0
    %806 = vperm.xlu0 %805, %v788
    %v807 = vpop.permute.xlu0 %806
    %810 = vset.pattern.permute.xlu0 0
    %811 = vperm.xlu0 %810, %v789
    %v812 = vpop.permute.xlu0 %811
    %815 = vset.pattern.permute.xlu0 0
    %816 = vperm.xlu0 %815, %v790
    %v817 = vpop.permute.xlu0 %816
    %820 = vset.pattern.permute.xlu0 0
    %821 = vperm.xlu0 %820, %v791
    %v822 = vpop.permute.xlu0 %821
    %825 = vset.pattern.permute.xlu0 0
    %826 = vperm.xlu0 %825, %v792
    %v827 = vpop.permute.xlu0 %826
    %830 = vset.pattern.permute.xlu0 0
    %831 = vperm.xlu0 %830, %v793
    %v832 = vpop.permute.xlu0 %831
    %835 = vset.pattern.permute.xlu0 0
    %836 = vperm.xlu0 %835, %v794
    %v837 = vpop.permute.xlu0 %836
    %840 = vset.pattern.permute.xlu0 0
    %841 = vperm.xlu0 %840, %v795
    %v842 = vpop.permute.xlu0 %841
    %845 = vset.pattern.permute.xlu0 0
    %846 = vperm.xlu0 %845, %v796
    %v847 = vpop.permute.xlu0 %846
    %850 = vset.pattern.permute.xlu0 0
    %851 = vperm.xlu0 %850, %v797
    %v852 = vpop.permute.xlu0 %851
    %855 = vset.pattern.permute.xlu0 0
    %856 = vperm.xlu0 %855, %v798
    %v857 = vpop.permute.xlu0 %856
    %860 = vset.pattern.permute.xlu0 0
    %861 = vperm.xlu0 %860, %v799
    %v862 = vpop.permute.xlu0 %861
    %865 = vset.pattern.permute.xlu0 0
    %866 = vperm.xlu0 %865, %v800
    %v867 = vpop.permute.xlu0 %866
    %870 = vset.pattern.permute.xlu0 0
    %871 = vperm.xlu0 %870, %v801
    %v872 = vpop.permute.xlu0 %871
    %875 = vset.pattern.permute.xlu0 0
    %876 = vperm.xlu0 %875, %v802
    %v877 = vpop.permute.xlu0 %876
    %880 = vset.pattern.permute.xlu0 0
    %881 = vperm.xlu0 %880, %v803
    %v882 = vpop.permute.xlu0 %881
    %v900 = vunpack.c.l.b16 %v740
    %v901 = vunpack.c.h.b16 %v740
    %v902 = vunpack.c.l.b16 %v741
    %v903 = vunpack.c.h.b16 %v741
    %v904 = vunpack.c.l.b16 %v742
    %v905 = vunpack.c.h.b16 %v742
    %v906 = vunpack.c.l.b16 %v743
    %v907 = vunpack.c.h.b16 %v743
    %v908 = vunpack.c.l.b16 %v744
    %v909 = vunpack.c.h.b16 %v744
    %v910 = vunpack.c.l.b16 %v745
    %v911 = vunpack.c.h.b16 %v745
    %v912 = vunpack.c.l.b16 %v746
    %v913 = vunpack.c.h.b16 %v746
    %v914 = vunpack.c.l.b16 %v747
    %v915 = vunpack.c.h.b16 %v747
    %v916 = vunpack.c.l.b16 %v748
    %v917 = vunpack.c.h.b16 %v748
    %v918 = vunpack.c.l.b16 %v749
    %v919 = vunpack.c.h.b16 %v749
    %v920 = vunpack.c.l.b16 %v750
    %v921 = vunpack.c.h.b16 %v750
    %v922 = vunpack.c.l.b16 %v751
    %v923 = vunpack.c.h.b16 %v751
    %v924 = vunpack.c.l.b16 %v752
    %v925 = vunpack.c.h.b16 %v752
    %v926 = vunpack.c.l.b16 %v753
    %v927 = vunpack.c.h.b16 %v753
    %v928 = vunpack.c.l.b16 %v754
    %v929 = vunpack.c.h.b16 %v754
    %v930 = vunpack.c.l.b16 %v755
    %v931 = vunpack.c.h.b16 %v755
    %v932 = vpack.c.b16 %v902, %v900
    %v933 = vpack.c.b16 %v903, %v901
    %v934 = vpack.c.b16 %v906, %v904
    %v935 = vpack.c.b16 %v907, %v905
    %v936 = vpack.c.b16 %v910, %v908
    %v937 = vpack.c.b16 %v911, %v909
    %v938 = vpack.c.b16 %v914, %v912
    %v939 = vpack.c.b16 %v915, %v913
    %v940 = vpack.c.b16 %v918, %v916
    %v941 = vpack.c.b16 %v919, %v917
    %v942 = vpack.c.b16 %v922, %v920
    %v943 = vpack.c.b16 %v923, %v921
    %v944 = vpack.c.b16 %v926, %v924
    %v945 = vpack.c.b16 %v927, %v925
    %v946 = vpack.c.b16 %v930, %v928
    %v947 = vpack.c.b16 %v931, %v929
    %964 = vmatprep.subr.bf16.mxu0 %v757
    %965 = vmatpush1.bf16.msra.mxu0 %v756
    %966 = vmatprep.subr.bf16.mxu0 %v759
    %967 = vmatpush1.bf16.msra.mxu0 %v758
    %968 = vmatprep.subr.bf16.mxu0 %v761
    %969 = vmatpush1.bf16.msra.mxu0 %v760
    %970 = vmatprep.subr.bf16.mxu0 %v763
    %971 = vmatpush1.bf16.msra.mxu0 %v762
    %972 = vmatprep.subr.bf16.mxu0 %v765
    %973 = vmatpush1.bf16.msra.mxu0 %v764
    %974 = vmatprep.subr.bf16.mxu0 %v767
    %975 = vmatpush1.bf16.msra.mxu0 %v766
    %976 = vmatprep.subr.bf16.mxu0 %v769
    %977 = vmatpush1.bf16.msra.mxu0 %v768
    %978 = vmatprep.subr.bf16.mxu0 %v771
    %979 = vmatpush1.bf16.msra.mxu0 %v770
    %980 = vmatprep.subr.bf16.mxu0 %v773
    %981 = vmatpush1.bf16.msra.mxu0 %v772
    %982 = vmatprep.subr.bf16.mxu0 %v775
    %983 = vmatpush1.bf16.msra.mxu0 %v774
    %984 = vmatprep.subr.bf16.mxu0 %v777
    %985 = vmatpush1.bf16.msra.mxu0 %v776
    %986 = vmatprep.subr.bf16.mxu0 %v779
    %987 = vmatpush1.bf16.msra.mxu0 %v778
    %988 = vmatprep.subr.bf16.mxu0 %v781
    %989 = vmatpush1.bf16.msra.mxu0 %v780
    %990 = vmatprep.subr.bf16.mxu0 %v783
    %991 = vmatpush1.bf16.msra.mxu0 %v782
    %992 = vmatprep.subr.bf16.mxu0 %v785
    %993 = vmatpush1.bf16.msra.mxu0 %v784
    %994 = vmatprep.subr.bf16.mxu0 %v787
    %995 = vmatpush1.bf16.msra.mxu0 %v786
    %996 = vmatprep.mubr.bf16.mxu0 %v933
    %997 = vmatmul.mubr.bf16.gmra.mrb[0].mxu0 %v932
    %v998 = vpop.f32.mrb[0].mxu0
    %v999 = vadd.f32 %v807, %v998
    %v1000 = vpop.f32.mrb[0].mxu0
    %v1001 = vadd.f32 %v807, %v1000
    %v1002 = vpop.f32.mrb[0].mxu0
    %v1003 = vadd.f32 %v812, %v1002
    %v1004 = vpop.f32.mrb[0].mxu0
    %v1005 = vadd.f32 %v812, %v1004
    %1006 = vmatprep.mubr.bf16.mxu0 %v935
    %1007 = vmatmul.mubr.bf16.gmra.mrb[0].mxu0 %v934
    %v1008 = vpop.f32.mrb[0].mxu0
    %v1009 = vadd.f32 %v817, %v1008
    %v1010 = vpop.f32.mrb[0].mxu0
    %v1011 = vadd.f32 %v817, %v1010
    %v1012 = vpop.f32.mrb[0].mxu0
    %v1013 = vadd.f32 %v822, %v1012
    %v1014 = vpop.f32.mrb[0].mxu0
    %v1015 = vadd.f32 %v822, %v1014
    %1016 = vmatprep.mubr.bf16.mxu0 %v937
    %1017 = vmatmul.mubr.bf16.gmra.mrb[0].mxu0 %v936
    %v1018 = vpop.f32.mrb[0].mxu0
    %v1019 = vadd.f32 %v827, %v1018
    %v1020 = vpop.f32.mrb[0].mxu0
    %v1021 = vadd.f32 %v827, %v1020
    %v1022 = vpop.f32.mrb[0].mxu0
    %v1023 = vadd.f32 %v832, %v1022
    %v1024 = vpop.f32.mrb[0].mxu0
    %v1025 = vadd.f32 %v832, %v1024
    %1026 = vmatprep.mubr.bf16.mxu0 %v939
    %1027 = vmatmul.mubr.bf16.gmra.mrb[0].mxu0 %v938
    %v1028 = vpop.f32.mrb[0].mxu0
    %v1029 = vadd.f32 %v837, %v1028
    %v1030 = vpop.f32.mrb[0].mxu0
    %v1031 = vadd.f32 %v837, %v1030
    %v1032 = vpop.f32.mrb[0].mxu0
    %v1033 = vadd.f32 %v842, %v1032
    %v1034 = vpop.f32.mrb[0].mxu0
    %v1035 = vadd.f32 %v842, %v1034
    %1036 = vmatprep.mubr.bf16.mxu0 %v941
    %1037 = vmatmul.mubr.bf16.gmra.mrb[0].mxu0 %v940
    %v1038 = vpop.f32.mrb[0].mxu0
    %v1039 = vadd.f32 %v847, %v1038
    %v1040 = vpop.f32.mrb[0].mxu0
    %v1041 = vadd.f32 %v847, %v1040
    %v1042 = vpop.f32.mrb[0].mxu0
    %v1043 = vadd.f32 %v852, %v1042
    %v1044 = vpop.f32.mrb[0].mxu0
    %v1045 = vadd.f32 %v852, %v1044
    %1046 = vmatprep.mubr.bf16.mxu0 %v943
    %1047 = vmatmul.mubr.bf16.gmra.mrb[0].mxu0 %v942
    %v1048 = vpop.f32.mrb[0].mxu0
    %v1049 = vadd.f32 %v857, %v1048
    %v1050 = vpop.f32.mrb[0].mxu0
    %v1051 = vadd.f32 %v857, %v1050
    %v1052 = vpop.f32.mrb[0].mxu0
    %v1053 = vadd.f32 %v862, %v1052
    %v1054 = vpop.f32.mrb[0].mxu0
    %v1055 = vadd.f32 %v862, %v1054
    %1056 = vmatprep.mubr.bf16.mxu0 %v945
    %1057 = vmatmul.mubr.bf16.gmra.mrb[0].mxu0 %v944
    %v1058 = vpop.f32.mrb[0].mxu0
    %v1059 = vadd.f32 %v867, %v1058
    %v1060 = vpop.f32.mrb[0].mxu0
    %v1061 = vadd.f32 %v867, %v1060
    %v1062 = vpop.f32.mrb[0].mxu0
    %v1063 = vadd.f32 %v872, %v1062
    %v1064 = vpop.f32.mrb[0].mxu0
    %v1065 = vadd.f32 %v872, %v1064
    %1066 = vmatprep.mubr.bf16.mxu0 %v947
    %1067 = vmatmul.mubr.bf16.gmra.mrb[0].mxu0 %v946
    %v1068 = vpop.f32.mrb[0].mxu0
    %v1069 = vadd.f32 %v877, %v1068
    %v1070 = vpop.f32.mrb[0].mxu0
    %v1071 = vadd.f32 %v877, %v1070
    %v1072 = vpop.f32.mrb[0].mxu0
    %v1073 = vadd.f32 %v882, %v1072
    %v1074 = vpop.f32.mrb[0].mxu0
    %v1075 = vadd.f32 %v882, %v1074
    %1076 = vdwg.mxu0
    %v1077 = vmax.f32 %v999, 0.0
    %v1078 = vmax.f32 %v1001, 0.0
    %v1079 = vmax.f32 %v1003, 0.0
    %v1080 = vmax.f32 %v1005, 0.0
    %v1081 = vmax.f32 %v1009, 0.0
    %v1082 = vmax.f32 %v1011, 0.0
    %v1083 = vmax.f32 %v1013, 0.0
    %v1084 = vmax.f32 %v1015, 0.0
    %v1085 = vmax.f32 %v1019, 0.0
    %v1086 = vmax.f32 %v1021, 0.0
    %v1087 = vmax.f32 %v1023, 0.0
    %v1088 = vmax.f32 %v1025, 0.0
    %v1089 = vmax.f32 %v1029, 0.0
    %v1090 = vmax.f32 %v1031, 0.0
    %v1091 = vmax.f32 %v1033, 0.0
    %v1092 = vmax.f32 %v1035, 0.0
    %v1093 = vmax.f32 %v1039, 0.0
    %v1094 = vmax.f32 %v1041, 0.0
    %v1095 = vmax.f32 %v1043, 0.0
    %v1096 = vmax.f32 %v1045, 0.0
    %v1097 = vmax.f32 %v1049, 0.0
    %v1098 = vmax.f32 %v1051, 0.0
    %v1099 = vmax.f32 %v1053, 0.0
    %v1100 = vmax.f32 %v1055, 0.0
    %v1101 = vmax.f32 %v1059, 0.0
    %v1102 = vmax.f32 %v1061, 0.0
    %v1103 = vmax.f32 %v1063, 0.0
    %v1104 = vmax.f32 %v1065, 0.0
    %v1105 = vmax.f32 %v1069, 0.0
    %v1106 = vmax.f32 %v1071, 0.0
    %v1107 = vmax.f32 %v1073, 0.0
    %v1108 = vmax.f32 %v1075, 0.0
    %v1109 = vld [vmem:[%s5] sm:$0xf]
    %v1110 = vld [vmem:[%s5 + $0x4] sm:$0xf]
    %v1111 = vld [vmem:[%s5 + $0x8] sm:$0xf]
    %v1112 = vld [vmem:[%s5 + $0xc] sm:$0xf]
    %v1113 = vld [vmem:[%s5 + $0x10] sm:$0xf]
    %v1114 = vld [vmem:[%s5 + $0x14] sm:$0xf]
    %v1115 = vld [vmem:[%s5 + $0x18] sm:$0xf]
    %v1116 = vld [vmem:[%s5 + $0x1c] sm:$0xf]
    %v1117 = vld [vmem:[%s5 + $0x20] sm:$0xf]
    %v1118 = vld [vmem:[%s5 + $0x24] sm:$0xf]
    %v1119 = vld [vmem:[%s5 + $0x28] sm:$0xf]
    %v1120 = vld [vmem:[%s5 + $0x2c] sm:$0xf]
    %v1121 = vld [vmem:[%s5 + $0x30] sm:$0xf]
    %v1122 = vld [vmem:[%s5 + $0x34] sm:$0xf]
    %v1123 = vld [vmem:[%s5 + $0x38] sm:$0xf]
    %v1124 = vld [vmem:[%s5 + $0x3c] sm:$0xf]
    %v1125 = vpack.c.bf16 %v1079, %v1077
    %v1126 = vpack.c.bf16 %v1080, %v1078
    %v1127 = vpack.c.bf16 %v1083, %v1081
    %v1128 = vpack.c.bf16 %v1084, %v1082
    %v1129 = vpack.c.bf16 %v1087, %v1085
    %v1130 = vpack.c.bf16 %v1088, %v1086
    %v1131 = vpack.c.bf16 %v1091, %v1089
    %v1132 = vpack.c.bf16 %v1092, %v1090
    %v1133 = vpack.c.bf16 %v1095, %v1093
    %v1134 = vpack.c.bf16 %v1096, %v1094
    %v1135 = vpack.c.bf16 %v1099, %v1097
    %v1136 = vpack.c.bf16 %v1100, %v1098
    %v1137 = vpack.c.bf16 %v1103, %v1101
    %v1138 = vpack.c.bf16 %v1104, %v1102
    %v1139 = vpack.c.bf16 %v1107, %v1105
    %v1140 = vpack.c.bf16 %v1108, %v1106
    %v1141 = vld [vmem:[%s6] sm:$0xff]
    %v1142 = vld [vmem:[%s6 + $0x8] sm:$0xff]
    %v1143 = vld [vmem:[%s6 + $0x10] sm:$0xff]
    %v1144 = vld [vmem:[%s6 + $0x18] sm:$0xff]
    %v1145 = vld [vmem:[%s6 + $0x20] sm:$0xff]
    %v1146 = vld [vmem:[%s6 + $0x28] sm:$0xff]
    %v1147 = vld [vmem:[%s6 + $0x30] sm:$0xff]
    %v1148 = vld [vmem:[%s6 + $0x38] sm:$0xff]
    %v1149 = vld [vmem:[%s6 + $0x40] sm:$0xff]
    %v1150 = vld [vmem:[%s6 + $0x48] sm:$0xff]
    %v1151 = vld [vmem:[%s6 + $0x50] sm:$0xff]
    %v1152 = vld [vmem:[%s6 + $0x58] sm:$0xff]
    %v1153 = vld [vmem:[%s6 + $0x60] sm:$0xff]
    %v1154 = vld [vmem:[%s6 + $0x68] sm:$0xff]
    %v1155 = vld [vmem:[%s6 + $0x70] sm:$0xff]
    %v1156 = vld [vmem:[%s6 + $0x78] sm:$0xff]
    %1158 = vset.pattern.permute.xlu0 0
    %1159 = vperm.xlu0 %1158, %v1141
    %v1160 = vpop.permute.xlu0 %1159
    %1163 = vset.pattern.permute.xlu0 0
    %1164 = vperm.xlu0 %1163, %v1142
    %v1165 = vpop.permute.xlu0 %1164
    %1168 = vset.pattern.permute.xlu0 0
    %1169 = vperm.xlu0 %1168, %v1143
    %v1170 = vpop.permute.xlu0 %1169
    %1173 = vset.pattern.permute.xlu0 0
    %1174 = vperm.xlu0 %1173, %v1144
    %v1175 = vpop.permute.xlu0 %1174
    %1178 = vset.pattern.permute.xlu0 0
    %1179 = vperm.xlu0 %1178, %v1145
    %v1180 = vpop.permute.xlu0 %1179
    %1183 = vset.pattern.permute.xlu0 0
    %1184 = vperm.xlu0 %1183, %v1146
    %v1185 = vpop.permute.xlu0 %1184
    %1188 = vset.pattern.permute.xlu0 0
    %1189 = vperm.xlu0 %1188, %v1147
    %v1190 = vpop.permute.xlu0 %1189
    %1193 = vset.pattern.permute.xlu0 0
    %1194 = vperm.xlu0 %1193, %v1148
    %v1195 = vpop.permute.xlu0 %1194
    %1198 = vset.pattern.permute.xlu0 0
    %1199 = vperm.xlu0 %1198, %v1149
    %v1200 = vpop.permute.xlu0 %1199
    %1203 = vset.pattern.permute.xlu0 0
    %1204 = vperm.xlu0 %1203, %v1150
    %v1205 = vpop.permute.xlu0 %1204
    %1208 = vset.pattern.permute.xlu0 0
    %1209 = vperm.xlu0 %1208, %v1151
    %v1210 = vpop.permute.xlu0 %1209
    %1213 = vset.pattern.permute.xlu0 0
    %1214 = vperm.xlu0 %1213, %v1152
    %v1215 = vpop.permute.xlu0 %1214
    %1218 = vset.pattern.permute.xlu0 0
    %1219 = vperm.xlu0 %1218, %v1153
    %v1220 = vpop.permute.xlu0 %1219
    %1223 = vset.pattern.permute.xlu0 0
    %1224 = vperm.xlu0 %1223, %v1154
    %v1225 = vpop.permute.xlu0 %1224
    %1228 = vset.pattern.permute.xlu0 0
    %1229 = vperm.xlu0 %1228, %v1155
    %v1230 = vpop.permute.xlu0 %1229
    %1233 = vset.pattern.permute.xlu0 0
    %1234 = vperm.xlu0 %1233, %v1156
    %v1235 = vpop.permute.xlu0 %1234
    %v1253 = vunpack.c.l.b16 %v1109
    %v1254 = vunpack.c.l.b16 %v1110
    %v1255 = vunpack.c.l.b16 %v1111
    %v1256 = vunpack.c.l.b16 %v1112
    %v1257 = vunpack.c.l.b16 %v1113
    %v1258 = vunpack.c.l.b16 %v1114
    %v1259 = vunpack.c.l.b16 %v1115
    %v1260 = vunpack.c.l.b16 %v1116
    %v1261 = vunpack.c.l.b16 %v1117
    %v1262 = vunpack.c.l.b16 %v1118
    %v1263 = vunpack.c.l.b16 %v1119
    %v1264 = vunpack.c.l.b16 %v1120
    %v1265 = vunpack.c.l.b16 %v1121
    %v1266 = vunpack.c.l.b16 %v1122
    %v1267 = vunpack.c.l.b16 %v1123
    %v1268 = vunpack.c.l.b16 %v1124
    %v1269 = vpack.c.b16 %v1254, %v1253
    %v1270 = vpack.c.b16 %v1256, %v1255
    %v1271 = vpack.c.b16 %v1258, %v1257
    %v1272 = vpack.c.b16 %v1260, %v1259
    %v1273 = vpack.c.b16 %v1262, %v1261
    %v1274 = vpack.c.b16 %v1264, %v1263
    %v1275 = vpack.c.b16 %v1266, %v1265
    %v1276 = vpack.c.b16 %v1268, %v1267
    %1285 = vmatprep.subr.bf16.mxu0 %v1126
    %1286 = vmatpush1.bf16.msra.mxu0 %v1125
    %1287 = vmatprep.subr.bf16.mxu0 %v1128
    %1288 = vmatpush1.bf16.msra.mxu0 %v1127
    %1289 = vmatprep.subr.bf16.mxu0 %v1130
    %1290 = vmatpush1.bf16.msra.mxu0 %v1129
    %1291 = vmatprep.subr.bf16.mxu0 %v1132
    %1292 = vmatpush1.bf16.msra.mxu0 %v1131
    %1293 = vmatprep.subr.bf16.mxu0 %v1134
    %1294 = vmatpush1.bf16.msra.mxu0 %v1133
    %1295 = vmatprep.subr.bf16.mxu0 %v1136
    %1296 = vmatpush1.bf16.msra.mxu0 %v1135
    %1297 = vmatprep.subr.bf16.mxu0 %v1138
    %1298 = vmatpush1.bf16.msra.mxu0 %v1137
    %1299 = vmatprep.subr.bf16.mxu0 %v1140
    %1300 = vmatpush1.bf16.msra.mxu0 %v1139
    %1301 = vmatprep.subr.bf16.mxu0 0
    %1302 = vmatpush1.bf16.msra.mxu0 0
    %1303 = vmatprep.subr.bf16.mxu0 0
    %1304 = vmatpush1.bf16.msra.mxu0 0
    %1305 = vmatprep.subr.bf16.mxu0 0
    %1306 = vmatpush1.bf16.msra.mxu0 0
    %1307 = vmatprep.subr.bf16.mxu0 0
    %1308 = vmatpush1.bf16.msra.mxu0 0
    %1309 = vmatprep.subr.bf16.mxu0 0
    %1310 = vmatpush1.bf16.msra.mxu0 0
    %1311 = vmatprep.subr.bf16.mxu0 0
    %1312 = vmatpush1.bf16.msra.mxu0 0
    %1313 = vmatprep.subr.bf16.mxu0 0
    %1314 = vmatpush1.bf16.msra.mxu0 0
    %1315 = vmatprep.subr.bf16.mxu0 0
    %1316 = vmatpush1.bf16.msra.mxu0 0
    %1317 = vmatprep.mubr.bf16.mxu0 0
    %1318 = vmatmul.mubr.bf16.gmra.mrb[0].mxu0 %v1269
    %v1319 = vpop.f32.mrb[0].mxu0
    %v1320 = vadd.f32 %v1160, %v1319
    %v1321 = vpop.f32.mrb[0].mxu0
    %v1322 = vadd.f32 %v1160, %v1321
    %v1323 = vpop.f32.mrb[0].mxu0
    %v1324 = vadd.f32 %v1165, %v1323
    %v1325 = vpop.f32.mrb[0].mxu0
    %v1326 = vadd.f32 %v1165, %v1325
    %1327 = vmatprep.mubr.bf16.mxu0 0
    %1328 = vmatmul.mubr.bf16.gmra.mrb[0].mxu0 %v1270
    %v1329 = vpop.f32.mrb[0].mxu0
    %v1330 = vadd.f32 %v1170, %v1329
    %v1331 = vpop.f32.mrb[0].mxu0
    %v1332 = vadd.f32 %v1170, %v1331
    %v1333 = vpop.f32.mrb[0].mxu0
    %v1334 = vadd.f32 %v1175, %v1333
    %v1335 = vpop.f32.mrb[0].mxu0
    %v1336 = vadd.f32 %v1175, %v1335
    %1337 = vmatprep.mubr.bf16.mxu0 0
    %1338 = vmatmul.mubr.bf16.gmra.mrb[0].mxu0 %v1271
    %v1339 = vpop.f32.mrb[0].mxu0
    %v1340 = vadd.f32 %v1180, %v1339
    %v1341 = vpop.f32.mrb[0].mxu0
    %v1342 = vadd.f32 %v1180, %v1341
    %v1343 = vpop.f32.mrb[0].mxu0
    %v1344 = vadd.f32 %v1185, %v1343
    %v1345 = vpop.f32.mrb[0].mxu0
    %v1346 = vadd.f32 %v1185, %v1345
    %1347 = vmatprep.mubr.bf16.mxu0 0
    %1348 = vmatmul.mubr.bf16.gmra.mrb[0].mxu0 %v1272
    %v1349 = vpop.f32.mrb[0].mxu0
    %v1350 = vadd.f32 %v1190, %v1349
    %v1351 = vpop.f32.mrb[0].mxu0
    %v1352 = vadd.f32 %v1190, %v1351
    %v1353 = vpop.f32.mrb[0].mxu0
    %v1354 = vadd.f32 %v1195, %v1353
    %v1355 = vpop.f32.mrb[0].mxu0
    %v1356 = vadd.f32 %v1195, %v1355
    %1357 = vmatprep.mubr.bf16.mxu0 0
    %1358 = vmatmul.mubr.bf16.gmra.mrb[0].mxu0 %v1273
    %v1359 = vpop.f32.mrb[0].mxu0
    %v1360 = vadd.f32 %v1200, %v1359
    %v1361 = vpop.f32.mrb[0].mxu0
    %v1362 = vadd.f32 %v1200, %v1361
    %v1363 = vpop.f32.mrb[0].mxu0
    %v1364 = vadd.f32 %v1205, %v1363
    %v1365 = vpop.f32.mrb[0].mxu0
    %v1366 = vadd.f32 %v1205, %v1365
    %1367 = vmatprep.mubr.bf16.mxu0 0
    %1368 = vmatmul.mubr.bf16.gmra.mrb[0].mxu0 %v1274
    %v1369 = vpop.f32.mrb[0].mxu0
    %v1370 = vadd.f32 %v1210, %v1369
    %v1371 = vpop.f32.mrb[0].mxu0
    %v1372 = vadd.f32 %v1210, %v1371
    %v1373 = vpop.f32.mrb[0].mxu0
    %v1374 = vadd.f32 %v1215, %v1373
    %v1375 = vpop.f32.mrb[0].mxu0
    %v1376 = vadd.f32 %v1215, %v1375
    %1377 = vmatprep.mubr.bf16.mxu0 0
    %1378 = vmatmul.mubr.bf16.gmra.mrb[0].mxu0 %v1275
    %v1379 = vpop.f32.mrb[0].mxu0
    %v1380 = vadd.f32 %v1220, %v1379
    %v1381 = vpop.f32.mrb[0].mxu0
    %v1382 = vadd.f32 %v1220, %v1381
    %v1383 = vpop.f32.mrb[0].mxu0
    %v1384 = vadd.f32 %v1225, %v1383
    %v1385 = vpop.f32.mrb[0].mxu0
    %v1386 = vadd.f32 %v1225, %v1385
    %1387 = vmatprep.mubr.bf16.mxu0 0
    %1388 = vmatmul.mubr.bf16.gmra.mrb[0].mxu0 %v1276
    %v1389 = vpop.f32.mrb[0].mxu0
    %v1390 = vadd.f32 %v1230, %v1389
    %v1391 = vpop.f32.mrb[0].mxu0
    %v1392 = vadd.f32 %v1230, %v1391
    %v1393 = vpop.f32.mrb[0].mxu0
    %v1394 = vadd.f32 %v1235, %v1393
    %v1395 = vpop.f32.mrb[0].mxu0
    %v1396 = vadd.f32 %v1235, %v1395
    %1397 = vdwg.mxu0
    %v1398 = vmax.f32 %v1320, 0.0
    %v1399 = vmax.f32 %v1322, 0.0
    %v1400 = vmax.f32 %v1324, 0.0
    %v1401 = vmax.f32 %v1326, 0.0
    %v1402 = vmax.f32 %v1330, 0.0
    %v1403 = vmax.f32 %v1332, 0.0
    %v1404 = vmax.f32 %v1334, 0.0
    %v1405 = vmax.f32 %v1336, 0.0
    %v1406 = vmax.f32 %v1340, 0.0
    %v1407 = vmax.f32 %v1342, 0.0
    %v1408 = vmax.f32 %v1344, 0.0
    %v1409 = vmax.f32 %v1346, 0.0
    %v1410 = vmax.f32 %v1350, 0.0
    %v1411 = vmax.f32 %v1352, 0.0
    %v1412 = vmax.f32 %v1354, 0.0
    %v1413 = vmax.f32 %v1356, 0.0
    %v1414 = vmax.f32 %v1360, 0.0
    %v1415 = vmax.f32 %v1362, 0.0
    %v1416 = vmax.f32 %v1364, 0.0
    %v1417 = vmax.f32 %v1366, 0.0
    %v1418 = vmax.f32 %v1370, 0.0
    %v1419 = vmax.f32 %v1372, 0.0
    %v1420 = vmax.f32 %v1374, 0.0
    %v1421 = vmax.f32 %v1376, 0.0
    %v1422 = vmax.f32 %v1380, 0.0
    %v1423 = vmax.f32 %v1382, 0.0
    %v1424 = vmax.f32 %v1384, 0.0
    %v1425 = vmax.f32 %v1386, 0.0
    %v1426 = vmax.f32 %v1390, 0.0
    %v1427 = vmax.f32 %v1392, 0.0
    %v1428 = vmax.f32 %v1394, 0.0
    %v1429 = vmax.f32 %v1396, 0.0
    %v1430 = vld [vmem:[%s7] sm:$0x7]
    %v1431 = vpack.c.bf16 %v1400, %v1398
    %v1432 = vpack.c.bf16 %v1401, %v1399
    %v1433 = vpack.c.bf16 %v1404, %v1402
    %v1434 = vpack.c.bf16 %v1405, %v1403
    %v1435 = vpack.c.bf16 %v1408, %v1406
    %v1436 = vpack.c.bf16 %v1409, %v1407
    %v1437 = vpack.c.bf16 %v1412, %v1410
    %v1438 = vpack.c.bf16 %v1413, %v1411
    %v1439 = vpack.c.bf16 %v1416, %v1414
    %v1440 = vpack.c.bf16 %v1417, %v1415
    %v1441 = vpack.c.bf16 %v1420, %v1418
    %v1442 = vpack.c.bf16 %v1421, %v1419
    %v1443 = vpack.c.bf16 %v1424, %v1422
    %v1444 = vpack.c.bf16 %v1425, %v1423
    %v1445 = vpack.c.bf16 %v1428, %v1426
    %v1446 = vpack.c.bf16 %v1429, %v1427
    %v1447 = vld [vmem:[%s8] sm:$0x3f]
    %1449 = vset.pattern.permute.xlu0 0
    %1450 = vperm.xlu0 %1449, %v1447
    %v1451 = vpop.permute.xlu0 %1450
    %1453 = vmatprep.subr.bf16.mxu0 %v1432
    %1454 = vmatpush1.bf16.msra.mxu0 %v1431
    %1455 = vmatprep.subr.bf16.mxu0 %v1434
    %1456 = vmatpush1.bf16.msra.mxu0 %v1433
    %1457 = vmatprep.subr.bf16.mxu0 %v1436
    %1458 = vmatpush1.bf16.msra.mxu0 %v1435
    %1459 = vmatprep.subr.bf16.mxu0 %v1438
    %1460 = vmatpush1.bf16.msra.mxu0 %v1437
    %1461 = vmatprep.subr.bf16.mxu0 %v1440
    %1462 = vmatpush1.bf16.msra.mxu0 %v1439
    %1463 = vmatprep.subr.bf16.mxu0 %v1442
    %1464 = vmatpush1.bf16.msra.mxu0 %v1441
    %1465 = vmatprep.subr.bf16.mxu0 %v1444
    %1466 = vmatpush1.bf16.msra.mxu0 %v1443
    %1467 = vmatprep.subr.bf16.mxu0 %v1446
    %1468 = vmatpush1.bf16.msra.mxu0 %v1445
    %1469 = vmatprep.subr.bf16.mxu0 0
    %1470 = vmatpush1.bf16.msra.mxu0 0
    %1471 = vmatprep.subr.bf16.mxu0 0
    %1472 = vmatpush1.bf16.msra.mxu0 0
    %1473 = vmatprep.subr.bf16.mxu0 0
    %1474 = vmatpush1.bf16.msra.mxu0 0
    %1475 = vmatprep.subr.bf16.mxu0 0
    %1476 = vmatpush1.bf16.msra.mxu0 0
    %1477 = vmatprep.subr.bf16.mxu0 0
    %1478 = vmatpush1.bf16.msra.mxu0 0
    %1479 = vmatprep.subr.bf16.mxu0 0
    %1480 = vmatpush1.bf16.msra.mxu0 0
    %1481 = vmatprep.subr.bf16.mxu0 0
    %1482 = vmatpush1.bf16.msra.mxu0 0
    %1483 = vmatprep.subr.bf16.mxu0 0
    %1484 = vmatpush1.bf16.msra.mxu0 0
    %1485 = vmatprep.mubr.bf16.mxu0 0
    %1486 = vmatmul.mubr.bf16.gmra.mrb[0].mxu0 %v1430
    %v1487 = vpop.f32.mrb[0].mxu0
    %v1488 = vadd.f32 %v1451, %v1487
    %v1489 = vpop.f32.mrb[0].mxu0
    %v1490 = vadd.f32 %v1451, %v1489
    %v1491 = vpop.f32.mrb[0].mxu0
    %v1492 = vpop.f32.mrb[0].mxu0
    %1493 = vdwg.mxu0
    %1494 = vst [vmem:[#allocation2] sm:$0x3f] %v1488
    %1495 = vst [vmem:[#allocation2 + $0x8] sm:$0x3f] %v1490
    // Predicated region
    $region38: #{tpu_custom_call.1} parent=1 // pred_check
      _
    $region39: #{tpu_custom_call.1} parent=1 // pred_check_branch
      %1497 = sbr.rel (0) target = $region41
    $region40: #{tpu_custom_call.1} parent=1 // pred_region
      %s1499 = ssub.s32 256, 256
      %1500 = vsyncadd [#allocation3], %s1499
      %s1502 = sshll.u32 [#allocation2], 4
      %s1503 = int_to_ptr.vmem [resolvable:$true] %s1502
      %1505 = dma.vmem_to_hbm [thread:$0]  %s1503, 256, %s9, [#allocation3]
    $region41: #{tpu_custom_call.1} parent=1 // pred_fallthru
      _
    // Predicated region
    $region42: #{tpu_custom_call.1} parent=1 // pred_check
      _
    $region43: #{tpu_custom_call.1} parent=1 // pred_check_branch
      %1507 = sbr.rel (0) target = $region45
    $region44: #{tpu_custom_call.1} parent=1 // pred_region
      %1508 = dma.done [#allocation3], 256
    $region45: #{tpu_custom_call.1} parent=1 // pred_fallthru
      _
    %1509 = vsyncpa [#allocation3], 1

</llo_original>
